<compile_context>
chip_gen: v6e
topology: v6e:2x2x1
jax: 0.10.0
libtpu: 0.0.40
codegen_flags: <defaults>
</compile_context>

<pallas_src>
import numpy as np

import jax
import jax.numpy as jnp
from jax import lax
from jax.experimental import pallas as pl
from jax.experimental.pallas import tpu as pltpu

ALPHA = 1.0
BETA = 0.5
LAMBDA = 0.2

_LANE = 128
_MAX_FREQ_TILE = 512          # rfft bins per grid step (cos+sin => 2x lanes)

_BASIS_CACHE = {}


def _round_up(x, m):
    return ((x + m - 1) // m) * m


def _get_rfft_basis(n):
    """Cached bf16 real-DFT basis, tile-interleaved as [C_f | S_f] per freq
    tile, plus f32 symmetry weights (1 for DC/Nyquist, 2 interior, 0 padding)."""
    if n in _BASIS_CACHE:
        return _BASIS_CACHE[n]

    nh = n // 2 + 1                                   # rfft bin count
    tf = min(_round_up(nh, _LANE), _MAX_FREQ_TILE)
    nh_pad = _round_up(nh, tf)
    n_tiles = nh_pad // tf

    t_idx = np.arange(n, dtype=np.int64)
    k_idx = np.arange(nh, dtype=np.int64)
    # exact integer (t*k) mod n avoids float angle drift at large n
    ang = 2.0 * np.pi * (np.outer(t_idx, k_idx) % n).astype(np.float64) / float(n)
    cos_b = np.zeros((n, nh_pad), np.float64)
    sin_b = np.zeros((n, nh_pad), np.float64)
    cos_b[:, :nh] = np.cos(ang)
    sin_b[:, :nh] = np.sin(ang)

    # tile-interleaved layout: freq-tile f = columns [f*2tf, (f+1)*2tf) = [C_f | S_f]
    cs = np.concatenate(
        [cos_b.reshape(n, n_tiles, tf), sin_b.reshape(n, n_tiles, tf)], axis=-1
    ).reshape(n, n_tiles * 2 * tf)

    w = np.zeros((1, nh_pad), np.float32)
    w[0, :nh] = 2.0
    w[0, 0] = 1.0
    if n % 2 == 0:
        w[0, n // 2] = 1.0                            # Nyquist bin counted once

    out = (jnp.asarray(cs, dtype=jnp.bfloat16),
           jnp.asarray(w, dtype=jnp.float32),
           tf, n_tiles)
    _BASIS_CACHE[n] = out
    return out


def _lst_crppg_kernel(pred_ref, targ_ref, cs_ref, w_ref, out_ref,
                      lhs_ref, s1_ref, s2_ref, lt_ref):
    f = pl.program_id(0)
    nf = pl.num_programs(0)
    B, N = pred_ref.shape
    TF = cs_ref.shape[1] // 2

    # --- first freq tile: normalize, time-domain MSE, stacked bf16 LHS, zero accs
    @pl.when(f == 0)
    def _init():
        p = pred_ref[...].astype(jnp.float32)
        t = targ_ref[...].astype(jnp.float32)
        eps2 = jnp.float32(1e-24)                     # == torch clamp(||x||, 1e-12)
        p_n = p * lax.rsqrt(jnp.maximum(jnp.sum(p * p, axis=1, keepdims=True), eps2))
        t_n = t * lax.rsqrt(jnp.maximum(jnp.sum(t * t, axis=1, keepdims=True), eps2))
        d = p_n - t_n
        lt_ref[0] = jnp.sum(d * d) / jnp.float32(B * N)
        lhs_ref[...] = jnp.concatenate([p_n, t_n], axis=0).astype(jnp.bfloat16)
        s1_ref[...] = jnp.zeros_like(s1_ref)
        s2_ref[...] = jnp.zeros_like(s2_ref)

    # --- every freq tile: one fused bf16 MXU matmul for p & t against [cos|sin]
    res = jnp.dot(lhs_ref[...], cs_ref[...],
                  preferred_element_type=jnp.float32)           # (2B, 2*TF)
    pr, pi = res[:B, :TF], res[:B, TF:]
    tr, ti = res[B:, :TF], res[B:, TF:]
    psd_p = pr * pr + pi * pi
    psd_t = tr * tr + ti * ti

    w = w_ref[...]                                              # (1, TF)
    # di = log(psd_p) - log(psd_t); padded lanes (w==0) masked to 0 so the
    # log/reciprocal garbage in the zero-basis columns never reaches the sums.
    di = jnp.where(w > 0.0,
                   jnp.log(psd_p * pl.reciprocal(psd_t, approx=True)),
                   0.0)                                         # (B, TF)
    wd = w * di                                                 # fold symmetry weight once
    s1_ref[...] += jnp.sum(wd, axis=1, keepdims=True)
    s2_ref[...] += jnp.sum(wd * di, axis=1, keepdims=True)

    # --- last freq tile: hybrid log-spectral loss + combine
    @pl.when(f == nf - 1)
    def _finalize():
        n_f = jnp.float32(N)
        s1 = s1_ref[...]
        s2 = s2_ref[...]
        hybrid = s2 / n_f - (LAMBDA / (n_f * n_f)) * s1 * s1    # (B, 1)
        l_freq = jnp.sum(hybrid) / jnp.float32(B)
        out_ref[0, 0] = ALPHA * lt_ref[0] + BETA * l_freq


def lst_crppg_loss(predictions, targets):
    """JAX/Pallas equivalent of LSTCrPPGLoss.forward (alpha*MSE + beta*log-PSD)."""
    if predictions.ndim == 1:
        predictions = predictions.reshape(1, -1)
    if targets.ndim == 1:
        targets = targets.reshape(1, -1)
    predictions = predictions.astype(jnp.float32)
    targets = targets.astype(jnp.float32)
    B, N = predictions.shape

    cs, w, tf, n_tiles = _get_rfft_basis(N)

    # TODO(synk): when scoring many (B, N) windows per step, stack them into one
    # call (>=128/256 LHS rows) and add a "parallel" batch grid axis so the two
    # v7x TensorCores split the work.
    out = pl.pallas_call(
        _lst_crppg_kernel,
        out_shape=jax.ShapeDtypeStruct((1, 1), jnp.float32),
        grid_spec=pltpu.PrefetchScalarGridSpec(
            num_scalar_prefetch=0,
            grid=(n_tiles,),
            in_specs=[
                pl.BlockSpec((B, N), lambda f: (0, 0)),         # predictions (resident)
                pl.BlockSpec((B, N), lambda f: (0, 0)),         # targets     (resident)
                pl.BlockSpec((N, 2 * tf), lambda f: (0, f)),    # [cos|sin] freq tile
                pl.BlockSpec((1, tf), lambda f: (0, f)),        # symmetry weights tile
            ],
            out_specs=pl.BlockSpec((1, 1), lambda f: (0, 0),
                                   memory_space=pltpu.SMEM),
            scratch_shapes=[
                pltpu.VMEM((2 * B, N), jnp.bfloat16),           # stacked normalized p/t
                pltpu.VMEM((B, 1), jnp.float32),                # running sum(di)
                pltpu.VMEM((B, 1), jnp.float32),                # running sum(di^2)
                pltpu.SMEM((1,), jnp.float32),                  # time-domain MSE
            ],
        ),
        compiler_params=pltpu.CompilerParams(
            dimension_semantics=("arbitrary",)),                # freq axis = reduction
    )(predictions, targets, cs, w)
    return out[0, 0]


def _reference_loss(predictions, targets):
    """Pure-JAX reference (mirrors the PyTorch module) for sanity checking."""
    eps = 1e-12
    p = predictions / jnp.maximum(
        jnp.linalg.norm(predictions, axis=1, keepdims=True), eps)
    t = targets / jnp.maximum(
        jnp.linalg.norm(targets, axis=1, keepdims=True), eps)
    B, N = p.shape
    l_time = jnp.mean((p - t) ** 2)
    psd_p = jnp.abs(jnp.fft.fft(p, axis=-1)) ** 2
    psd_t = jnp.abs(jnp.fft.fft(t, axis=-1)) ** 2
    di = jnp.log(psd_p) - jnp.log(psd_t)
    hybrid = (1.0 / N) * jnp.sum(di ** 2, axis=-1) \
        - (LAMBDA / N ** 2) * jnp.sum(di, axis=-1) ** 2
    l_freq = jnp.sum(hybrid) / B
    return ALPHA * l_time + BETA * l_freq


if __name__ == "__main__":
    key = jax.random.PRNGKey(0)
    k1, k2 = jax.random.split(key)
    B, N = 2, 128   # small (batch, signal_length) consistent with rPPG signals
    predictions = jax.random.normal(k1, (B, N), dtype=jnp.float32)
    targets = jax.random.normal(k2, (B, N), dtype=jnp.float32)

    loss = jax.block_until_ready(lst_crppg_loss(predictions, targets))
    ref = jax.block_until_ready(_reference_loss(predictions, targets))

    assert jnp.isfinite(loss), "kernel produced non-finite loss"
    # bf16 DFT basis (per perf review) => allow a few % on this log-spectral loss
    assert jnp.allclose(loss, ref, rtol=5e-2, atol=5e-2), (loss, ref)
    print("KERNEL_OK")
</pallas_src>

<mosaic_0001>
module attributes {stable_mosaic.version = 11 : i64} {
  func.func @_lst_crppg_kernel(%arg0: i32, %arg1: memref<2x128xf32, #tpu.memory_space<vmem>>, %arg2: memref<2x128xf32, #tpu.memory_space<vmem>>, %arg3: memref<128x256xbf16, #tpu.memory_space<vmem>>, %arg4: memref<1x128xf32, #tpu.memory_space<vmem>>, %arg5: memref<1x1xf32, #tpu.memory_space<smem>>, %arg6: memref<4x128xbf16, #tpu.memory_space<vmem>>, %arg7: memref<2x1xf32, #tpu.memory_space<vmem>>, %arg8: memref<2x1xf32, #tpu.memory_space<vmem>>, %arg9: memref<1xf32, #tpu.memory_space<smem>>) attributes {dimension_semantics = [#tpu.dimension_semantics<arbitrary>], iteration_bounds = array<i64: 1>, scalar_prefetch = 0 : i64, scratch_operands = 4 : i64, tpu.core_type = #tpu.core_type<tc>, window_params = [{pipeline_mode = #tpu.pipeline_mode<synchronous>, transform_indices = @transform_0, window_bounds = array<i64: 2, 128>}, {pipeline_mode = #tpu.pipeline_mode<synchronous>, transform_indices = @transform_1, window_bounds = array<i64: 2, 128>}, {transform_indices = @transform_2, window_bounds = array<i64: 128, 256>}, {transform_indices = @transform_3, window_bounds = array<i64: 1, 128>}, {transform_indices = @transform_4, window_bounds = array<i64: 1, 1>}]} {
    %c0_i32 = arith.constant 0 : i32
    %0 = arith.cmpi eq, %arg0, %c0_i32 : i32
    %1 = arith.extui %0 : i1 to i32
    %c0_i32_0 = arith.constant 0 : i32
    %2 = arith.cmpi ne, %1, %c0_i32_0 : i32
    scf.if %2 {
      %c0_20 = arith.constant 0 : index
      %c0_21 = arith.constant 0 : index
      %42 = vector.load %arg1[%c0_20, %c0_21] : memref<2x128xf32, #tpu.memory_space<vmem>>, vector<2x128xf32>
      %c0_22 = arith.constant 0 : index
      %c0_23 = arith.constant 0 : index
      %43 = vector.load %arg2[%c0_22, %c0_23] : memref<2x128xf32, #tpu.memory_space<vmem>>, vector<2x128xf32>
      %44 = arith.mulf %42, %42 : vector<2x128xf32>
      %cst_24 = arith.constant dense<0.000000e+00> : vector<2xf32>
      %45 = vector.multi_reduction <add>, %44, %cst_24 [1] : vector<2x128xf32> to vector<2xf32>
      %46 = vector.shape_cast %45 : vector<2xf32> to vector<2x1xf32>
      %cst_25 = arith.constant 1.000000e-24 : f32
      %47 = vector.broadcast %cst_25 : f32 to vector<2x1xf32>
      %48 = arith.maximumf %46, %47 : vector<2x1xf32>
      %49 = math.rsqrt %48 : vector<2x1xf32>
      %50 = vector.broadcast %49 : vector<2x1xf32> to vector<2x128xf32>
      %51 = arith.mulf %42, %50 : vector<2x128xf32>
      %52 = arith.mulf %43, %43 : vector<2x128xf32>
      %cst_26 = arith.constant dense<0.000000e+00> : vector<2xf32>
      %53 = vector.multi_reduction <add>, %52, %cst_26 [1] : vector<2x128xf32> to vector<2xf32>
      %54 = vector.shape_cast %53 : vector<2xf32> to vector<2x1xf32>
      %cst_27 = arith.constant 1.000000e-24 : f32
      %55 = vector.broadcast %cst_27 : f32 to vector<2x1xf32>
      %56 = arith.maximumf %54, %55 : vector<2x1xf32>
      %57 = math.rsqrt %56 : vector<2x1xf32>
      %58 = vector.broadcast %57 : vector<2x1xf32> to vector<2x128xf32>
      %59 = arith.mulf %43, %58 : vector<2x128xf32>
      %60 = arith.subf %51, %59 : vector<2x128xf32>
      %61 = arith.mulf %60, %60 : vector<2x128xf32>
      %62 = vector.shape_cast %61 : vector<2x128xf32> to vector<1x2x128xf32>
      %cst_28 = arith.constant dense<0.000000e+00> : vector<1xf32>
      %63 = vector.multi_reduction <add>, %62, %cst_28 [1, 2] : vector<1x2x128xf32> to vector<1xf32>
      %64 = vector.shape_cast %63 : vector<1xf32> to vector<1x1x1xf32>
      %65 = vector.extract %64[0, 0, 0] : f32 from vector<1x1x1xf32>
      %cst_29 = arith.constant 2.560000e+02 : f32
      %66 = arith.divf %65, %cst_29 : f32
      %c0_30 = arith.constant 0 : index
      %67 = memref.load %arg9[%c0_30] : memref<1xf32, #tpu.memory_space<smem>>
      memref.store %66, %arg9[%c0_30] : memref<1xf32, #tpu.memory_space<smem>>
      %68 = tpu.concatenate %51, %59 in 0 : vector<2x128xf32>, vector<2x128xf32> -> vector<4x128xf32>
      %69 = arith.truncf %68 : vector<4x128xf32> to vector<4x128xbf16>
      %c0_31 = arith.constant 0 : index
      %c0_32 = arith.constant 0 : index
      %70 = vector.load %arg6[%c0_31, %c0_32] : memref<4x128xbf16, #tpu.memory_space<vmem>>, vector<4x128xbf16>
      tpu.vector_store %arg6[%c0_31, %c0_32], %69 {strides = array<i32>} : memref<4x128xbf16, #tpu.memory_space<vmem>>, vector<4x128xbf16>,
      %cst_33 = arith.constant 0.000000e+00 : f32
      %71 = vector.broadcast %cst_33 : f32 to vector<2x1xf32>
      %c0_34 = arith.constant 0 : index
      %c0_35 = arith.constant 0 : index
      %72 = vector.load %arg7[%c0_34, %c0_35] : memref<2x1xf32, #tpu.memory_space<vmem>>, vector<2x1xf32>
      tpu.vector_store %arg7[%c0_34, %c0_35], %71 {strides = array<i32>} : memref<2x1xf32, #tpu.memory_space<vmem>>, vector<2x1xf32>,
      %cst_36 = arith.constant 0.000000e+00 : f32
      %73 = vector.broadcast %cst_36 : f32 to vector<2x1xf32>
      %c0_37 = arith.constant 0 : index
      %c0_38 = arith.constant 0 : index
      %74 = vector.load %arg8[%c0_37, %c0_38] : memref<2x1xf32, #tpu.memory_space<vmem>>, vector<2x1xf32>
      tpu.vector_store %arg8[%c0_37, %c0_38], %73 {strides = array<i32>} : memref<2x1xf32, #tpu.memory_space<vmem>>, vector<2x1xf32>,
    } else {
    }
    %c0 = arith.constant 0 : index
    %c0_1 = arith.constant 0 : index
    %3 = vector.load %arg6[%c0, %c0_1] : memref<4x128xbf16, #tpu.memory_space<vmem>>, vector<4x128xbf16>
    %c0_2 = arith.constant 0 : index
    %c0_3 = arith.constant 0 : index
    %4 = vector.load %arg3[%c0_2, %c0_3] : memref<128x256xbf16, #tpu.memory_space<vmem>>, vector<128x256xbf16>
    %cst = arith.constant dense<0.000000e+00> : vector<4x256xf32>
    %5 = tpu.matmul %3, %4, %cst {dimension_numbers = #tpu.dot_dimension_numbers<[1], [0], [0], [1], [0, 0, 1, 1], [], []>} : vector<4x128xbf16>, vector<128x256xbf16>, vector<4x256xf32> -> vector<4x256xf32>
    %6 = vector.extract_strided_slice %5 {offsets = [0, 0], sizes = [2, 128], strides = [1, 1]} : vector<4x256xf32> to vector<2x128xf32>
    %7 = vector.extract_strided_slice %5 {offsets = [0, 128], sizes = [2, 128], strides = [1, 1]} : vector<4x256xf32> to vector<2x128xf32>
    %8 = vector.extract_strided_slice %5 {offsets = [2, 0], sizes = [2, 128], strides = [1, 1]} : vector<4x256xf32> to vector<2x128xf32>
    %9 = vector.extract_strided_slice %5 {offsets = [2, 128], sizes = [2, 128], strides = [1, 1]} : vector<4x256xf32> to vector<2x128xf32>
    %10 = arith.mulf %6, %6 : vector<2x128xf32>
    %11 = arith.mulf %7, %7 : vector<2x128xf32>
    %12 = arith.addf %10, %11 : vector<2x128xf32>
    %13 = arith.mulf %8, %8 : vector<2x128xf32>
    %14 = arith.mulf %9, %9 : vector<2x128xf32>
    %15 = arith.addf %13, %14 : vector<2x128xf32>
    %c0_4 = arith.constant 0 : index
    %c0_5 = arith.constant 0 : index
    %16 = vector.load %arg4[%c0_4, %c0_5] : memref<1x128xf32, #tpu.memory_space<vmem>>, vector<1x128xf32>
    %cst_6 = arith.constant 0.000000e+00 : f32
    %17 = vector.broadcast %cst_6 : f32 to vector<1x128xf32>
    %18 = arith.cmpf ogt, %16, %17 : vector<1x128xf32>
    %19 = tpu.reciprocal %15 {approx = true} : vector<2x128xf32> -> vector<2x128xf32>
    %20 = arith.mulf %12, %19 : vector<2x128xf32>
    %21 = math.log %20 : vector<2x128xf32>
    %cst_7 = arith.constant 0.000000e+00 : f32
    %22 = vector.shape_cast %18 : vector<1x128xi1> to vector<1x128xi1>
    %23 = vector.broadcast %22 : vector<1x128xi1> to vector<2x128xi1>
    %24 = vector.broadcast %cst_7 : f32 to vector<2x128xf32>
    %25 = arith.select %23, %21, %24 : vector<2x128xi1>, vector<2x128xf32>
    %26 = vector.broadcast %16 : vector<1x128xf32> to vector<2x128xf32>
    %27 = arith.mulf %26, %25 : vector<2x128xf32>
    %c0_8 = arith.constant 0 : index
    %c0_9 = arith.constant 0 : index
    %28 = vector.load %arg7[%c0_8, %c0_9] : memref<2x1xf32, #tpu.memory_space<vmem>>, vector<2x1xf32>
    %cst_10 = arith.constant dense<0.000000e+00> : vector<2xf32>
    %29 = vector.multi_reduction <add>, %27, %cst_10 [1] : vector<2x128xf32> to vector<2xf32>
    %30 = vector.shape_cast %29 : vector<2xf32> to vector<2x1xf32>
    %31 = arith.addf %28, %30 : vector<2x1xf32>
    %c0_11 = arith.constant 0 : index
    %c0_12 = arith.constant 0 : index
    %32 = vector.load %arg7[%c0_11, %c0_12] : memref<2x1xf32, #tpu.memory_space<vmem>>, vector<2x1xf32>
    tpu.vector_store %arg7[%c0_11, %c0_12], %31 {strides = array<i32>} : memref<2x1xf32, #tpu.memory_space<vmem>>, vector<2x1xf32>,
    %c0_13 = arith.constant 0 : index
    %c0_14 = arith.constant 0 : index
    %33 = vector.load %arg8[%c0_13, %c0_14] : memref<2x1xf32, #tpu.memory_space<vmem>>, vector<2x1xf32>
    %34 = arith.mulf %27, %25 : vector<2x128xf32>
    %cst_15 = arith.constant dense<0.000000e+00> : vector<2xf32>
    %35 = vector.multi_reduction <add>, %34, %cst_15 [1] : vector<2x128xf32> to vector<2xf32>
    %36 = vector.shape_cast %35 : vector<2xf32> to vector<2x1xf32>
    %37 = arith.addf %33, %36 : vector<2x1xf32>
    %c0_16 = arith.constant 0 : index
    %c0_17 = arith.constant 0 : index
    %38 = vector.load %arg8[%c0_16, %c0_17] : memref<2x1xf32, #tpu.memory_space<vmem>>, vector<2x1xf32>
    tpu.vector_store %arg8[%c0_16, %c0_17], %37 {strides = array<i32>} : memref<2x1xf32, #tpu.memory_space<vmem>>, vector<2x1xf32>,
    %c0_i32_18 = arith.constant 0 : i32
    %39 = arith.cmpi eq, %arg0, %c0_i32_18 : i32
    %40 = arith.extui %39 : i1 to i32
    %c0_i32_19 = arith.constant 0 : i32
    %41 = arith.cmpi ne, %40, %c0_i32_19 : i32
    scf.if %41 {
      %c0_20 = arith.constant 0 : index
      %c0_21 = arith.constant 0 : index
      %42 = vector.load %arg7[%c0_20, %c0_21] : memref<2x1xf32, #tpu.memory_space<vmem>>, vector<2x1xf32>
      %c0_22 = arith.constant 0 : index
      %c0_23 = arith.constant 0 : index
      %43 = vector.load %arg8[%c0_22, %c0_23] : memref<2x1xf32, #tpu.memory_space<vmem>>, vector<2x1xf32>
      %cst_24 = arith.constant 1.280000e+02 : f32
      %44 = vector.broadcast %cst_24 : f32 to vector<2x1xf32>
      %45 = arith.divf %43, %44 : vector<2x1xf32>
      %cst_25 = arith.constant 1.280000e+02 : f32
      %cst_26 = arith.constant 1.280000e+02 : f32
      %46 = arith.mulf %cst_25, %cst_26 : f32
      %cst_27 = arith.constant 2.000000e-01 : f32
      %47 = arith.divf %cst_27, %46 : f32
      %48 = vector.broadcast %47 : f32 to vector<2x1xf32>
      %49 = arith.mulf %48, %42 : vector<2x1xf32>
      %50 = arith.mulf %49, %42 : vector<2x1xf32>
      %51 = arith.subf %45, %50 : vector<2x1xf32>
      %52 = vector.shape_cast %51 : vector<2x1xf32> to vector<1x2x1xf32>
      %cst_28 = arith.constant dense<0.000000e+00> : vector<1xf32>
      %53 = vector.multi_reduction <add>, %52, %cst_28 [1, 2] : vector<1x2x1xf32> to vector<1xf32>
      %54 = vector.shape_cast %53 : vector<1xf32> to vector<1x1x1xf32>
      %55 = vector.extract %54[0, 0, 0] : f32 from vector<1x1x1xf32>
      %cst_29 = arith.constant 2.000000e+00 : f32
      %56 = arith.divf %55, %cst_29 : f32
      %c0_30 = arith.constant 0 : index
      %57 = memref.load %arg9[%c0_30] : memref<1xf32, #tpu.memory_space<smem>>
      %cst_31 = arith.constant 1.000000e+00 : f32
      %58 = arith.mulf %cst_31, %57 : f32
      %cst_32 = arith.constant 5.000000e-01 : f32
      %59 = arith.mulf %cst_32, %56 : f32
      %60 = arith.addf %58, %59 : f32
      %c0_33 = arith.constant 0 : index
      %c0_34 = arith.constant 0 : index
      %61 = memref.load %arg5[%c0_33, %c0_34] : memref<1x1xf32, #tpu.memory_space<smem>>
      memref.store %60, %arg5[%c0_33, %c0_34] : memref<1x1xf32, #tpu.memory_space<smem>>
    } else {
    }
    return
  }
  func.func @transform_0(%arg0: i32) -> (i32, i32) {
    %c0_i32 = arith.constant 0 : i32
    %c0_i32_0 = arith.constant 0 : i32
    %c0_i32_1 = arith.constant 0 : i32
    return %c0_i32, %c0_i32_0 : i32, i32
  }
  func.func @transform_1(%arg0: i32) -> (i32, i32) {
    %c0_i32 = arith.constant 0 : i32
    %c0_i32_0 = arith.constant 0 : i32
    %c0_i32_1 = arith.constant 0 : i32
    return %c0_i32, %c0_i32_0 : i32, i32
  }
  func.func @transform_2(%arg0: i32) -> (i32, i32) {
    %c0_i32 = arith.constant 0 : i32
    %c0_i32_0 = arith.constant 0 : i32
    return %c0_i32, %arg0 : i32, i32
  }
  func.func @transform_3(%arg0: i32) -> (i32, i32) {
    %c0_i32 = arith.constant 0 : i32
    %c0_i32_0 = arith.constant 0 : i32
    return %c0_i32, %arg0 : i32, i32
  }
  func.func @transform_4(%arg0: i32) -> (i32, i32) {
    %c0_i32 = arith.constant 0 : i32
    %c0_i32_0 = arith.constant 0 : i32
    %c0_i32_1 = arith.constant 0 : i32
    return %c0_i32, %c0_i32_0 : i32, i32
  }
}

</mosaic_0001>

<llo_original>
// kernel: tpu_custom_call.1
$region0: #{tpu_custom_call.1}
  #allocation0 [shape = 'u32[]', space=smem, size = 0x4, offset = 0x4, fixed_abs, tag = 'smem constant byte address 0x4 - core index']
  #allocation1 [shape = 'u32[144,128]{1,0:T(1,128)}', space=vmem, size = 0x12000, scoped, tag = 'internal scratch']
  #allocation2 [shape = 'bf16[4,128]{1,0:T(4,128)(2,1)}', space=vmem, size = 0x400, scoped, tag = 'scratch operand']
  #allocation3 [shape = 'f32[2,1]{1,0:T(2,128)}', space=vmem, size = 0x400, scoped, tag = 'scratch operand']
  #allocation4 [shape = 'f32[2,1]{1,0:T(2,128)}', space=vmem, size = 0x400, scoped, tag = 'scratch operand']
  #allocation5 [shape = 'f32[1]{0:T(128)}', space=smem, size = 0x200, scoped, tag = 'scratch operand']
  %s0 = inlined_call_operand.hbm [shape: f32[2,128], index: 0, kind: input, shape index: {}]
  %s1 = inlined_call_operand.hbm [shape: f32[2,128], index: 1, kind: input, shape index: {}]
  %s2 = inlined_call_operand.hbm [shape: bf16[128,256], index: 2, kind: input, shape index: {}]
  %s3 = inlined_call_operand.vmem [shape: f32[1,128], index: 3, kind: input, shape index: {}]
  %s4 = inlined_call_operand.hbm [shape: f32[1,1], index: 4, kind: output, shape index: {}]
  %s5 = sld [smem:[#allocation0]]
  $region46: #{tpu_custom_call.1} parent=0
    _
  %s7 = ssub.s32 1, %s5
  %s8 = scalar_select 0, %s7, %s5
  $region1: #{tpu_custom_call.1} parent=0
    #allocation6 [shape = 'u8[1024]{0}', space=vmem, size = 0x400, scoped, tag = 'input window, operand 0, single buffered']
    #allocation7 [shape = 's32[1]{0}', space=sflag, size = 0x4, scoped, tag = 'scoped memory for tpu_custom_call.1']
    #allocation8 [shape = 's32[1]{0}', space=sflag, size = 0x4, scoped, tag = 'scoped memory for tpu_custom_call.1']
    #allocation9 [shape = 'u8[1024]{0}', space=vmem, size = 0x400, scoped, tag = 'input window, operand 1, single buffered']
    #allocation10 [shape = 's32[1]{0}', space=sflag, size = 0x4, scoped, tag = 'scoped memory for tpu_custom_call.1']
    #allocation11 [shape = 'u8[65536]{0}', space=vmem, size = 0x10000, scoped, tag = 'input window, operand 2, single buffered']
    #allocation12 [shape = 'u8[512]{0}', space=smem, size = 0x200, scoped, tag = 'output window, operand 0, single buffered']
    %9 = vsyncpa [#allocation7], 0
    %10 = vsyncpa [#allocation10], 0
    %11 = vsyncpa [#allocation8], 0
    // Predicated region
    $region2: #{tpu_custom_call.1} parent=1 // pred_check
      _
    $region3: #{tpu_custom_call.1} parent=1 // pred_check_branch
      %13 = sbr.rel (0) target = $region5
    $region4: #{tpu_custom_call.1} parent=1 // pred_region
      %s15 = ssub.s32 32, 32
      %16 = vsyncadd [#allocation7], %s15
      %s18 = sshll.u32 [#allocation6], 4
      %s19 = int_to_ptr.vmem [resolvable:$true] %s18
      %21 = dma.hbm_to_vmem [thread:$0]  %s0, 32, %s19, [#allocation7]
    $region5: #{tpu_custom_call.1} parent=1 // pred_fallthru
      _
    // Predicated region
    $region6: #{tpu_custom_call.1} parent=1 // pred_check
      _
    $region7: #{tpu_custom_call.1} parent=1 // pred_check_branch
      %23 = sbr.rel (0) target = $region9
    $region8: #{tpu_custom_call.1} parent=1 // pred_region
      %s25 = ssub.s32 32, 32
      %26 = vsyncadd [#allocation10], %s25
      %s28 = sshll.u32 [#allocation9], 4
      %s29 = int_to_ptr.vmem [resolvable:$true] %s28
      %31 = dma.hbm_to_vmem [thread:$0]  %s1, 32, %s29, [#allocation10]
    $region9: #{tpu_custom_call.1} parent=1 // pred_fallthru
      _
    // Predicated region
    $region10: #{tpu_custom_call.1} parent=1 // pred_check
      _
    $region11: #{tpu_custom_call.1} parent=1 // pred_check_branch
      %33 = sbr.rel (0) target = $region13
    $region12: #{tpu_custom_call.1} parent=1 // pred_region
      %s35 = ssub.s32 2048, 2048
      %36 = vsyncadd [#allocation10], %s35
      %s37 = sshll.u32 [#allocation11], 4
      %s38 = int_to_ptr.vmem [resolvable:$true] %s37
      %43 = dma.hbm_to_vmem [thread:$0]  %s2, 2048, %s38, [#allocation10], 128, 128, 8
    $region13: #{tpu_custom_call.1} parent=1 // pred_fallthru
      _
    // Predicated region
    $region14: #{tpu_custom_call.1} parent=1 // pred_check
      _
    $region15: #{tpu_custom_call.1} parent=1 // pred_check_branch
      %45 = sbr.rel (0) target = $region17
    $region16: #{tpu_custom_call.1} parent=1 // pred_region
      _
    $region17: #{tpu_custom_call.1} parent=1 // pred_fallthru
      _
    // Predicated region
    $region18: #{tpu_custom_call.1} parent=1 // pred_check
      _
    $region19: #{tpu_custom_call.1} parent=1 // pred_check_branch
      %47 = sbr.rel (0) target = $region21
    $region20: #{tpu_custom_call.1} parent=1 // pred_region
      %48 = dma.done [#allocation7], 32
    $region21: #{tpu_custom_call.1} parent=1 // pred_fallthru
      _
    // Predicated region
    $region22: #{tpu_custom_call.1} parent=1 // pred_check
      _
    $region23: #{tpu_custom_call.1} parent=1 // pred_check_branch
      %50 = sbr.rel (0) target = $region25
    $region24: #{tpu_custom_call.1} parent=1 // pred_region
      %51 = dma.done [#allocation10], 32
    $region25: #{tpu_custom_call.1} parent=1 // pred_fallthru
      _
    // Predicated region
    $region26: #{tpu_custom_call.1} parent=1 // pred_check
      _
    $region27: #{tpu_custom_call.1} parent=1 // pred_check_branch
      %53 = sbr.rel (0) target = $region29
    $region28: #{tpu_custom_call.1} parent=1 // pred_region
      %54 = dma.done [#allocation10], 2048
    $region29: #{tpu_custom_call.1} parent=1 // pred_fallthru
      _
    %p56 = scmp.eq.s32.totalorder 0, 0
    // Predicated region
    $region30: #{tpu_custom_call.1} parent=1 // pred_check
      %p57 = pneg %p56
    $region31: #{tpu_custom_call.1} parent=1 // pred_check_branch
      %59 = sbr.rel (%p57) target = $region33
    $region32: #{tpu_custom_call.1} parent=1 // pred_region
      %v60 = vld [vmem:[#allocation6] sm:$0x3]
      %v61 = vld [vmem:[#allocation9] sm:$0x3]
      %v62 = vmul.f32 %v60, %v60
      %vm63 = vcmask 1041408
      %v64 = vsel %vm63, %v62, 0.0
      %65 = vadd.xlane.f32.xlu0 %v64
      %v66 = vpop.xlane.xlu0 %65
      %v67 = vmax.f32 %v66, 1e-24
      %v68 = vrsqrt.pop %v67
      %v69 = vmul.f32 %v60, %v68
      %v70 = vmul.f32 %v61, %v61
      %v71 = vsel %vm63, %v70, 0.0
      %72 = vadd.xlane.f32.xlu0 %v71
      %v73 = vpop.xlane.xlu0 %72
      %v74 = vmax.f32 %v73, 1e-24
      %v75 = vrsqrt.pop %v74
      %v76 = vmul.f32 %v61, %v75
      %v77 = vsub.f32 %v69, %v76
      %v78 = vmul.f32 %v77, %v77
      %v79 = vsel %vm63, %v78, 0.0
      %80 = vadd.xlane.f32.xlu0 %v79
      %v81 = vpop.xlane.xlu0 %80
      %v82 = vrot.slane %v81, 4
      %v83 = vadd.f32 %v81, %v82
      %v84 = vrot.slane %v83, 2
      %v85 = vadd.f32 %v83, %v84
      %v86 = vrot.slane %v85, 1
      %v87 = vadd.f32 %v85, %v86
      %s88 = vtos %v87
      %v89 = vrcp.pop 256.0
      %s90 = vtos %v89
      %s91 = smul.f32 %s88, %s90
      %s92 = scalar_lea.smem [#allocation5], 0
      %93 = sst [smem:[%s92]] %s91
      %v95 = vrot.slane %v76, 6
      %v97 = vsel %vm63, %v69, %v95
      %v98 = vpack.c.bf16 %v97, %v97
      %99 = vst [vmem:[#allocation2] sm:$0x3] %v98
      %vm100 = vcmask 1024
      %101 = vst.msk [vmem:[#allocation3] sm:$0x3] %vm100, 0.0
      %102 = vst.msk [vmem:[#allocation4] sm:$0x3] %vm100, 0.0
    $region33: #{tpu_custom_call.1} parent=1 // pred_fallthru
      _
    %v103 = vld [vmem:[#allocation2] sm:$0x3]
    %v104 = vld [vmem:[#allocation11] sm:$0xff]
    %v105 = vld [vmem:[#allocation11 + $0x8] sm:$0xff]
    %v106 = vld [vmem:[#allocation11 + $0x10] sm:$0xff]
    %v107 = vld [vmem:[#allocation11 + $0x18] sm:$0xff]
    %v108 = vld [vmem:[#allocation11 + $0x20] sm:$0xff]
    %v109 = vld [vmem:[#allocation11 + $0x28] sm:$0xff]
    %v110 = vld [vmem:[#allocation11 + $0x30] sm:$0xff]
    %v111 = vld [vmem:[#allocation11 + $0x38] sm:$0xff]
    %v112 = vld [vmem:[#allocation11 + $0x40] sm:$0xff]
    %v113 = vld [vmem:[#allocation11 + $0x48] sm:$0xff]
    %v114 = vld [vmem:[#allocation11 + $0x50] sm:$0xff]
    %v115 = vld [vmem:[#allocation11 + $0x58] sm:$0xff]
    %v116 = vld [vmem:[#allocation11 + $0x60] sm:$0xff]
    %v117 = vld [vmem:[#allocation11 + $0x68] sm:$0xff]
    %v118 = vld [vmem:[#allocation11 + $0x70] sm:$0xff]
    %v119 = vld [vmem:[#allocation11 + $0x78] sm:$0xff]
    %v136 = vunpack.c.l.b16 %v104
    %v137 = vunpack.c.h.b16 %v104
    %v138 = vunpack.c.l.b16 %v105
    %v139 = vunpack.c.h.b16 %v105
    %v140 = vunpack.c.l.b16 %v106
    %v141 = vunpack.c.h.b16 %v106
    %v142 = vunpack.c.l.b16 %v107
    %v143 = vunpack.c.h.b16 %v107
    %v144 = vunpack.c.l.b16 %v108
    %v145 = vunpack.c.h.b16 %v108
    %v146 = vunpack.c.l.b16 %v109
    %v147 = vunpack.c.h.b16 %v109
    %v148 = vunpack.c.l.b16 %v110
    %v149 = vunpack.c.h.b16 %v110
    %v150 = vunpack.c.l.b16 %v111
    %v151 = vunpack.c.h.b16 %v111
    %v152 = vunpack.c.l.b16 %v112
    %v153 = vunpack.c.h.b16 %v112
    %v154 = vunpack.c.l.b16 %v113
    %v155 = vunpack.c.h.b16 %v113
    %v156 = vunpack.c.l.b16 %v114
    %v157 = vunpack.c.h.b16 %v114
    %v158 = vunpack.c.l.b16 %v115
    %v159 = vunpack.c.h.b16 %v115
    %v160 = vunpack.c.l.b16 %v116
    %v161 = vunpack.c.h.b16 %v116
    %v162 = vunpack.c.l.b16 %v117
    %v163 = vunpack.c.h.b16 %v117
    %v164 = vunpack.c.l.b16 %v118
    %v165 = vunpack.c.h.b16 %v118
    %v166 = vunpack.c.l.b16 %v119
    %v167 = vunpack.c.h.b16 %v119
    %v168 = vpack.c.b16 %v138, %v136
    %v169 = vpack.c.b16 %v139, %v137
    %v170 = vpack.c.b16 %v142, %v140
    %v171 = vpack.c.b16 %v143, %v141
    %v172 = vpack.c.b16 %v146, %v144
    %v173 = vpack.c.b16 %v147, %v145
    %v174 = vpack.c.b16 %v150, %v148
    %v175 = vpack.c.b16 %v151, %v149
    %v176 = vpack.c.b16 %v154, %v152
    %v177 = vpack.c.b16 %v155, %v153
    %v178 = vpack.c.b16 %v158, %v156
    %v179 = vpack.c.b16 %v159, %v157
    %v180 = vpack.c.b16 %v162, %v160
    %v181 = vpack.c.b16 %v163, %v161
    %v182 = vpack.c.b16 %v166, %v164
    %v183 = vpack.c.b16 %v167, %v165
    %200 = vmatprep.subr.bf16.mxu0 %v183
    %201 = vmatpush1.bf16.msra.mxu0 %v182
    %202 = vmatprep.subr.bf16.mxu0 %v181
    %203 = vmatpush1.bf16.msra.mxu0 %v180
    %204 = vmatprep.subr.bf16.mxu0 %v179
    %205 = vmatpush1.bf16.msra.mxu0 %v178
    %206 = vmatprep.subr.bf16.mxu0 %v177
    %207 = vmatpush1.bf16.msra.mxu0 %v176
    %208 = vmatprep.subr.bf16.mxu0 %v175
    %209 = vmatpush1.bf16.msra.mxu0 %v174
    %210 = vmatprep.subr.bf16.mxu0 %v173
    %211 = vmatpush1.bf16.msra.mxu0 %v172
    %212 = vmatprep.subr.bf16.mxu0 %v171
    %213 = vmatpush1.bf16.msra.mxu0 %v170
    %214 = vmatprep.subr.bf16.mxu0 %v169
    %215 = vmatpush1.bf16.msra.mxu0 %v168
    %216 = vmatprep.subr.bf16.mxu0 0
    %217 = vmatpush2.bf16.msra.mxu0 0
    %218 = vmatprep.subr.bf16.mxu0 0
    %219 = vmatpush2.bf16.msra.mxu0 0
    %220 = vmatprep.subr.bf16.mxu0 0
    %221 = vmatpush2.bf16.msra.mxu0 0
    %222 = vmatprep.subr.bf16.mxu0 0
    %223 = vmatpush2.bf16.msra.mxu0 0
    %224 = vmatprep.subr.bf16.mxu0 0
    %225 = vmatpush2.bf16.msra.mxu0 0
    %226 = vmatprep.subr.bf16.mxu0 0
    %227 = vmatpush2.bf16.msra.mxu0 0
    %228 = vmatprep.subr.bf16.mxu0 0
    %229 = vmatpush2.bf16.msra.mxu0 0
    %230 = vmatprep.subr.bf16.mxu0 0
    %231 = vmatpush2.bf16.msra.mxu0 0
    %232 = vmatprep.mubr.bf16.mxu0 0
    %233 = vmatmul.mubr.bf16.gmra.mxu0 %v103
    %v234 = vpop.f32.mrf.mxu0
    %v235 = vadd.f32 0.0, %v234
    %v236 = vpop.f32.mrf.mxu0
    %v237 = vadd.f32 0.0, %v236
    %v238 = vpop.f32.mrf.mxu0
    %v239 = vpop.f32.mrf.mxu0
    %240 = vdwg.mxu0
    %v241 = vmul.f32 %v235, %v235
    %v242 = vmul.f32 %v237, %v237
    %v243 = vadd.f32 %v241, %v242
    %v244 = vld [vmem:[%s3] sm:$0x1]
    %vm245 = vcmp.gt.f32.partialorder %v244, 0.0
    %v246 = vrcp.pop %v243
    %v248 = vrot.slane %v246, 2
    %v250 = vmul.f32 %v243, %v248
    %v251 = vlog2.pop %v250
    %v252 = vmul.f32 %v251, 0.6931472
    %v253 = vsel %vm245, 1, 0
    %v254 = vlaneseq
    %v255 = vshrl.u32 %v254, 7
    %v256 = vsub.s32 0, %v255
    %v257 = vrot.slane %v253, %v256
    %vm258 = vcmp.eq.s32.totalorder %v257, 1
    %v259 = vsel %vm258, %v252, 0.0
    %v261 = vlaneseq
    %v262 = vshrl.u32 %v261, 7
    %v263 = vsub.s32 0, %v262
    %v264 = vrot.slane %v244, %v263
    %v266 = vmul.f32 %v264, %v259
    %v267 = vld [vmem:[#allocation3] sm:$0x3]
    %vm268 = vcmask 1041408
    %v269 = vsel %vm268, %v266, 0.0
    %270 = vadd.xlane.f32.xlu0 %v269
    %v271 = vpop.xlane.xlu0 %270
    %v272 = vadd.f32 %v267, %v271
    %vm273 = vcmask 1024
    %274 = vst.msk [vmem:[#allocation3] sm:$0x3] %vm273, %v272
    %v275 = vld [vmem:[#allocation4] sm:$0x3]
    %v276 = vmul.f32 %v266, %v259
    %v277 = vsel %vm268, %v276, 0.0
    %278 = vadd.xlane.f32.xlu0 %v277
    %v279 = vpop.xlane.xlu0 %278
    %v280 = vadd.f32 %v275, %v279
    %281 = vst.msk [vmem:[#allocation4] sm:$0x3] %vm273, %v280
    // Predicated region
    $region34: #{tpu_custom_call.1} parent=1 // pred_check
      %p282 = pneg %p56
    $region35: #{tpu_custom_call.1} parent=1 // pred_check_branch
      %284 = sbr.rel (%p282) target = $region37
    $region36: #{tpu_custom_call.1} parent=1 // pred_region
      %v285 = vld [vmem:[#allocation3] sm:$0x3]
      %v286 = vld [vmem:[#allocation4] sm:$0x3]
      %v287 = vrcp.pop 128.0
      %v288 = vmul.f32 %v286, %v287
      %v289 = vmul.f32 %v285, 1.2207031e-05
      %v290 = vmul.f32 %v289, %v285
      %v291 = vsub.f32 %v288, %v290
      %v292 = vsel %vm273, %v291, 0.0
      %293 = vadd.xlane.f32.xlu0 %v292
      %v294 = vpop.xlane.xlu0 %293
      %v295 = vrot.slane %v294, 4
      %v296 = vadd.f32 %v294, %v295
      %v297 = vrot.slane %v296, 2
      %v298 = vadd.f32 %v296, %v297
      %v299 = vrot.slane %v298, 1
      %v300 = vadd.f32 %v298, %v299
      %s301 = vtos %v300
      %v302 = vrcp.pop 2.0
      %s303 = vtos %v302
      %s304 = smul.f32 %s301, %s303
      %s305 = sld [smem:[#allocation5]]
      %s306 = smul.f32 %s304, 0.5
      %s307 = sadd.f32 %s305, %s306
      %s308 = scalar_lea.smem [#allocation12], 0
      %309 = sst [smem:[%s308]] %s307
    $region37: #{tpu_custom_call.1} parent=1 // pred_fallthru
      _
    // Predicated region
    $region38: #{tpu_custom_call.1} parent=1 // pred_check
      _
    $region39: #{tpu_custom_call.1} parent=1 // pred_check_branch
      %311 = sbr.rel (0) target = $region41
    $region40: #{tpu_custom_call.1} parent=1 // pred_region
      %s313 = ssub.s32 16, 16
      %314 = vsyncadd [#allocation8], %s313
      %317 = dma.smem_to_hbm [#allocation12], 16, %s4, [#allocation8]
    $region41: #{tpu_custom_call.1} parent=1 // pred_fallthru
      _
    // Predicated region
    $region42: #{tpu_custom_call.1} parent=1 // pred_check
      _
    $region43: #{tpu_custom_call.1} parent=1 // pred_check_branch
      %319 = sbr.rel (0) target = $region45
    $region44: #{tpu_custom_call.1} parent=1 // pred_region
      %320 = dma.done [#allocation8], 16
    $region45: #{tpu_custom_call.1} parent=1 // pred_fallthru
      _
    %321 = sfence
    %322 = vsyncpa [#allocation7], 1
    %323 = vsyncpa [#allocation10], 1
    %324 = vsyncpa [#allocation8], 1

</llo_original>
